<compile_context>
chip_gen: v5e
topology: v5e:2x2
jax: 0.10.0
libtpu: 0.0.40
codegen_flags: <defaults>
</compile_context>

<pallas_src>
import functools

import jax
import jax.numpy as jnp
from jax import lax
from jax.experimental import pallas as pl
from jax.experimental.pallas import tpu as pltpu


# -----------------------------------------------------------------------------
# Pass 1: depthwise 3x3 (VPU taps) + pointwise 1x1 (MXU) + partial BN statistics
# -----------------------------------------------------------------------------
def _dwpw_stats_kernel(xp_ref, wdw_ref, wpw_ref, y_ref, sum_ref, sumsq_ref, *,
                       stride, tile_rows, wo):
    """Grid = (N, Ho // tile_rows), both axes parallel.

    xp_ref    : (1, Hp, Wp, Cin)  zero-padded NHWC image (block index constant in the
                                  row-tile axis -> stays resident, one DMA per image)
    wdw_ref   : (3, 3, Cin)       depthwise weights
    wpw_ref   : (Cout, Cin)       pointwise weights (torch channel-major layout)
    y_ref     : (1, Cout, M)      pre-BN pointwise output tile, channel-major,
                                  M = tile_rows * Wo (multiple of 128 -> lane-dense)
    sum_ref   : (1, Cout, 1)      per-tile  sum_m y      (partial BN stats)
    sumsq_ref : (1, Cout, 1)      per-tile  sum_m y^2    (partial BN stats)
    """
    r = pl.program_id(1)
    row0 = r * (tile_rows * stride)          # first padded input row used by this tile
    wdw = wdw_ref[...]                       # hoisted: one load for all 9 taps

    # ---- depthwise 3x3: 9 VPU MAC taps, accumulator initialised from tap 0 ----
    acc = None
    for kh in range(3):
        for kw in range(3):
            if stride == 1:
                patch = xp_ref[0, pl.ds(row0 + kh, tile_rows), pl.ds(kw, wo), :]
            else:
                # TODO(synk): for stride=2, deinterleave W (even/odd) in the wrapper
                # instead of paying a sublane-strided read on every tap.
                patch = xp_ref[0, pl.ds(row0 + kh, tile_rows, stride),
                               pl.ds(kw, wo, stride), :]
            term = patch * wdw[kh, kw, :]
            acc = term if acc is None else acc + term       # (tile_rows, Wo, Cin)

    # ---- pointwise 1x1 on the MXU ---------------------------------------------
    # Flatten the spatial dims (trailing Cin kept -> cheap leading-dim collapse) and
    # run an NT matmul (same dimension-number pattern as q @ k.T in attention):
    #   y[cout, m] = sum_cin wpw[cout, cin] * acc2d[m, cin]
    m = tile_rows * wo
    acc2d = acc.reshape(m, acc.shape[-1])                   # (M, Cin)
    y = lax.dot_general(wpw_ref[...], acc2d,
                        dimension_numbers=(((1,), (1,)), ((), ())),
                        preferred_element_type=jnp.float32)  # (Cout, M) channel-major
    y_ref[0] = y                                            # lane-dense store

    # ---- partial batch-norm statistics (combined globally in the wrapper) ------
    sum_ref[0] = jnp.sum(y, axis=1, keepdims=True)          # (Cout, 1)
    sumsq_ref[0] = jnp.sum(y * y, axis=1, keepdims=True)    # (Cout, 1)


# -----------------------------------------------------------------------------
# Pass 2: fused BatchNorm (pre-folded scale/shift) + ReLU, lane-dense
# -----------------------------------------------------------------------------
def _bn_relu_kernel(y_ref, scale_ref, shift_ref, o_ref):
    """o = relu(y * scale + shift); scale/shift fold BN stats, gamma/beta and biases."""
    o_ref[0] = jnp.maximum(y_ref[0] * scale_ref[...] + shift_ref[...], 0.0)


def _pick_tile_rows(ho, wo):
    """Largest row-tile that (a) divides Ho, (b) keeps M = R*Wo modest, (c) makes the
    (Cout, M) output block lane-dense (M % 128 == 0), and (d) leaves >= 2 row tiles
    when possible so the tiled BN-stats path is actually exercised."""
    divisors = [d for d in range(1, ho + 1) if ho % d == 0]
    cands = [d for d in divisors if d < ho and (d * wo) % 128 == 0 and d * wo <= 2048]
    if cands:
        return max(cands)
    cands = [d for d in divisors if d < ho and (d * wo) % 128 == 0]
    if cands:
        return min(cands)
    return ho  # single tile per image: block == full dims, always a legal BlockSpec


def depthwise_separable_block(x_nchw, params, stride, eps=1e-5):
    """NCHW in / NCHW out, PyTorch parameter layouts."""
    w_dw, b_dw, w_pw, b_pw, gamma, beta = params
    N, Cin, H, W = x_nchw.shape
    Cout = w_pw.shape[0]
    Ho = (H + 2 - 3) // stride + 1
    Wo = (W + 2 - 3) // stride + 1
    Hp, Wp = H + 2, W + 2

    # --- layout prep (XLA) ----------------------------------------------------
    # TODO(synk): fuse the transpose + pad into the kernel (clamped row windows +
    # masked boundary taps) to cut two extra HBM round trips over the input.
    x_nhwc = jnp.transpose(x_nchw, (0, 2, 3, 1)).astype(jnp.float32)
    xp = jnp.pad(x_nhwc, ((0, 0), (1, 1), (1, 1), (0, 0)))            # padding=1

    wdw = jnp.transpose(w_dw[:, 0, :, :], (1, 2, 0)).astype(jnp.float32)   # (3,3,Cin)
    wpw = w_pw[:, :, 0, 0].astype(jnp.float32)                             # (Cout,Cin)

    tile_rows = _pick_tile_rows(Ho, Wo)
    n_tiles = Ho // tile_rows
    M = tile_rows * Wo

    # Tiles are a few KB..MB, well under v7x's 64 MiB physical VMEM even with double
    # buffering; set the scoped limit explicitly so it is identical on v5e/v6e/v7x.
    cparams = pltpu.CompilerParams(
        dimension_semantics=("parallel", "parallel"),
        vmem_limit_bytes=32 * 1024 * 1024,
    )

    # --- pass 1: depthwise + pointwise (MXU) + per-tile BN stats ----------------
    y_flat, part_sum, part_sumsq = pl.pallas_call(
        functools.partial(_dwpw_stats_kernel,
                          stride=stride, tile_rows=tile_rows, wo=Wo),
        out_shape=(
            jax.ShapeDtypeStruct((N, Cout, Ho * Wo), jnp.float32),   # flattened NCHW
            jax.ShapeDtypeStruct((N * n_tiles, Cout, 1), jnp.float32),
            jax.ShapeDtypeStruct((N * n_tiles, Cout, 1), jnp.float32),
        ),
        grid_spec=pltpu.PrefetchScalarGridSpec(
            num_scalar_prefetch=0,
            grid=(N, n_tiles),
            in_specs=[
                # whole padded image per n; index constant in r -> no re-DMA per tile
                pl.BlockSpec((1, Hp, Wp, Cin), lambda n, r: (n, 0, 0, 0)),
                pl.BlockSpec((3, 3, Cin), lambda n, r: (0, 0, 0)),
                pl.BlockSpec((Cout, Cin), lambda n, r: (0, 0)),
            ],
            out_specs=(
                pl.BlockSpec((1, Cout, M), lambda n, r: (n, 0, r)),
                pl.BlockSpec((1, Cout, 1), lambda n, r: (n * n_tiles + r, 0, 0)),
                pl.BlockSpec((1, Cout, 1), lambda n, r: (n * n_tiles + r, 0, 0)),
            ),
        ),
        compiler_params=cparams,
    )(xp, wdw, wpw)

    # --- combine per-tile stats -> training-mode BN, fold everything to scale/shift
    cnt = float(N * Ho * Wo)
    tot = jnp.sum(part_sum[:, :, 0], axis=0)                 # (Cout,)
    tot_sq = jnp.sum(part_sumsq[:, :, 0], axis=0)            # (Cout,)
    mean = tot / cnt
    var = jnp.maximum(tot_sq / cnt - mean * mean, 0.0)       # biased (training-mode) var
    # Conv biases (b_dw, b_pw) add a per-out-channel constant to y *and* to its batch
    # mean, so they cancel exactly in (y - mean): fold them away (zero per-element work).
    del b_dw, b_pw
    scale = gamma.astype(jnp.float32) * lax.rsqrt(var + eps)     # (Cout,)
    shift = beta.astype(jnp.float32) - mean * scale              # (Cout,)

    # --- pass 2: fused relu(y*scale + shift), lane-dense, output is flattened NCHW
    out_flat = pl.pallas_call(
        _bn_relu_kernel,
        out_shape=jax.ShapeDtypeStruct((N, Cout, Ho * Wo), jnp.float32),
        grid_spec=pltpu.PrefetchScalarGridSpec(
            num_scalar_prefetch=0,
            grid=(N, n_tiles),
            in_specs=[
                pl.BlockSpec((1, Cout, M), lambda n, r: (n, 0, r)),
                pl.BlockSpec((Cout, 1), lambda n, r: (0, 0)),
                pl.BlockSpec((Cout, 1), lambda n, r: (0, 0)),
            ],
            out_specs=pl.BlockSpec((1, Cout, M), lambda n, r: (n, 0, r)),
        ),
        compiler_params=cparams,
    )(y_flat, scale.reshape(Cout, 1), shift.reshape(Cout, 1))

    return out_flat.reshape(N, Cout, Ho, Wo)       # free row-major unflatten (already NCHW)


def reference(x_nchw, params, stride, eps=1e-5):
    """Plain-JAX reference mirroring the PyTorch forward (training-mode BN)."""
    w_dw, b_dw, w_pw, b_pw, gamma, beta = params
    Cin = x_nchw.shape[1]
    hp = jax.lax.Precision.HIGHEST
    dw = jax.lax.conv_general_dilated(
        x_nchw, w_dw, window_strides=(stride, stride),
        padding=((1, 1), (1, 1)), feature_group_count=Cin,
        dimension_numbers=("NCHW", "OIHW", "NCHW"),
        precision=hp) + b_dw.reshape(1, -1, 1, 1)
    pw = jax.lax.conv_general_dilated(
        dw, w_pw, window_strides=(1, 1), padding="VALID",
        dimension_numbers=("NCHW", "OIHW", "NCHW"),
        precision=hp) + b_pw.reshape(1, -1, 1, 1)
    mean = jnp.mean(pw, axis=(0, 2, 3), keepdims=True)
    var = jnp.mean((pw - mean) ** 2, axis=(0, 2, 3), keepdims=True)
    yhat = (pw - mean) / jnp.sqrt(var + eps)
    return jnp.maximum(yhat * gamma.reshape(1, -1, 1, 1) + beta.reshape(1, -1, 1, 1), 0.0)


if __name__ == "__main__":
    N, Cin, Cout, H, W = 2, 4, 8, 16, 16
    stride = 1

    key = jax.random.PRNGKey(0)
    k = jax.random.split(key, 7)
    x = jax.random.normal(k[0], (N, Cin, H, W), jnp.float32)

    # deterministic synthetic parameters (PyTorch tensor layouts)
    w_dw = 0.1 * jax.random.normal(k[1], (Cin, 1, 3, 3), jnp.float32)     # depthwise weight
    b_dw = 0.1 * jax.random.normal(k[2], (Cin,), jnp.float32)             # depthwise bias
    w_pw = 0.1 * jax.random.normal(k[3], (Cout, Cin, 1, 1), jnp.float32)  # pointwise weight
    b_pw = 0.1 * jax.random.normal(k[4], (Cout,), jnp.float32)            # pointwise bias
    gamma = 1.0 + 0.1 * jax.random.normal(k[5], (Cout,), jnp.float32)     # BN weight
    beta = 0.1 * jax.random.normal(k[6], (Cout,), jnp.float32)            # BN bias
    params = (w_dw, b_dw, w_pw, b_pw, gamma, beta)

    out = depthwise_separable_block(x, params, stride)
    out = jax.block_until_ready(out)

    ref = jax.block_until_ready(reference(x, params, stride))
    assert out.shape == ref.shape, (out.shape, ref.shape)
    # Tolerance accommodates the MXU's reduced-precision f32 matmul passes while still
    # catching any layout / tiling / BN-statistics bug (those produce O(1) errors).
    assert jnp.allclose(out, ref, rtol=2e-2, atol=2e-2), float(jnp.max(jnp.abs(out - ref)))

    print("KERNEL_OK")
</pallas_src>

<mosaic_0001>
module attributes {stable_mosaic.version = 11 : i64} {
  func.func @_dwpw_stats_kernel(%arg0: i32, %arg1: i32, %arg2: memref<1x18x18x4xf32, #tpu.memory_space<vmem>>, %arg3: memref<3x3x4xf32, #tpu.memory_space<vmem>>, %arg4: memref<8x4xf32, #tpu.memory_space<vmem>>, %arg5: memref<1x8x128xf32, #tpu.memory_space<vmem>>, %arg6: memref<1x8x1xf32, #tpu.memory_space<vmem>>, %arg7: memref<1x8x1xf32, #tpu.memory_space<vmem>>) attributes {dimension_semantics = [#tpu.dimension_semantics<parallel>, #tpu.dimension_semantics<parallel>], iteration_bounds = array<i64: 2, 2>, scalar_prefetch = 0 : i64, scratch_operands = 0 : i64, tpu.core_type = #tpu.core_type<tc>, window_params = [{transform_indices = @transform_0, window_bounds = array<i64: 1, 18, 18, 4>}, {pipeline_mode = #tpu.pipeline_mode<synchronous>, transform_indices = @transform_1, window_bounds = array<i64: 3, 3, 4>}, {pipeline_mode = #tpu.pipeline_mode<synchronous>, transform_indices = @transform_2, window_bounds = array<i64: 8, 4>}, {transform_indices = @transform_3, window_bounds = array<i64: 1, 8, 128>}, {transform_indices = @transform_4, window_bounds = array<i64: 1, 8, 1>}, {transform_indices = @transform_5, window_bounds = array<i64: 1, 8, 1>}]} {
    %c8_i32 = arith.constant 8 : i32
    %0 = arith.muli %arg1, %c8_i32 : i32
    %c0 = arith.constant 0 : index
    %c0_0 = arith.constant 0 : index
    %c0_1 = arith.constant 0 : index
    %1 = vector.load %arg3[%c0, %c0_0, %c0_1] : memref<3x3x4xf32, #tpu.memory_space<vmem>>, vector<3x3x4xf32>
    %c0_i32 = arith.constant 0 : i32
    %2 = arith.addi %0, %c0_i32 : i32
    %c0_2 = arith.constant 0 : index
    %3 = arith.index_cast %2 : i32 to index
    %c0_3 = arith.constant 0 : index
    %c0_4 = arith.constant 0 : index
    %4 = vector.load %arg2[%c0_2, %3, %c0_3, %c0_4] : memref<1x18x18x4xf32, #tpu.memory_space<vmem>>, vector<1x8x16x4xf32>
    %5 = vector.shape_cast %4 : vector<1x8x16x4xf32> to vector<8x16x4xf32>
    %6 = vector.extract_strided_slice %1 {offsets = [0, 0, 0], sizes = [1, 1, 4], strides = [1, 1, 1]} : vector<3x3x4xf32> to vector<1x1x4xf32>
    %7 = vector.shape_cast %6 : vector<1x1x4xf32> to vector<4xf32>
    %8 = vector.shape_cast %7 : vector<4xf32> to vector<1x1x4xf32>
    %9 = vector.broadcast %8 : vector<1x1x4xf32> to vector<8x16x4xf32>
    %10 = arith.mulf %5, %9 : vector<8x16x4xf32>
    %c0_i32_5 = arith.constant 0 : i32
    %11 = arith.addi %0, %c0_i32_5 : i32
    %c0_6 = arith.constant 0 : index
    %12 = arith.index_cast %11 : i32 to index
    %c1 = arith.constant 1 : index
    %c0_7 = arith.constant 0 : index
    %13 = vector.load %arg2[%c0_6, %12, %c1, %c0_7] : memref<1x18x18x4xf32, #tpu.memory_space<vmem>>, vector<1x8x16x4xf32>
    %14 = vector.shape_cast %13 : vector<1x8x16x4xf32> to vector<8x16x4xf32>
    %15 = vector.extract_strided_slice %1 {offsets = [0, 1, 0], sizes = [1, 1, 4], strides = [1, 1, 1]} : vector<3x3x4xf32> to vector<1x1x4xf32>
    %16 = vector.shape_cast %15 : vector<1x1x4xf32> to vector<4xf32>
    %17 = vector.shape_cast %16 : vector<4xf32> to vector<1x1x4xf32>
    %18 = vector.broadcast %17 : vector<1x1x4xf32> to vector<8x16x4xf32>
    %19 = arith.mulf %14, %18 : vector<8x16x4xf32>
    %20 = arith.addf %10, %19 : vector<8x16x4xf32>
    %c0_i32_8 = arith.constant 0 : i32
    %21 = arith.addi %0, %c0_i32_8 : i32
    %c0_9 = arith.constant 0 : index
    %22 = arith.index_cast %21 : i32 to index
    %c2 = arith.constant 2 : index
    %c0_10 = arith.constant 0 : index
    %23 = vector.load %arg2[%c0_9, %22, %c2, %c0_10] : memref<1x18x18x4xf32, #tpu.memory_space<vmem>>, vector<1x8x16x4xf32>
    %24 = vector.shape_cast %23 : vector<1x8x16x4xf32> to vector<8x16x4xf32>
    %25 = vector.extract_strided_slice %1 {offsets = [0, 2, 0], sizes = [1, 1, 4], strides = [1, 1, 1]} : vector<3x3x4xf32> to vector<1x1x4xf32>
    %26 = vector.shape_cast %25 : vector<1x1x4xf32> to vector<4xf32>
    %27 = vector.shape_cast %26 : vector<4xf32> to vector<1x1x4xf32>
    %28 = vector.broadcast %27 : vector<1x1x4xf32> to vector<8x16x4xf32>
    %29 = arith.mulf %24, %28 : vector<8x16x4xf32>
    %30 = arith.addf %20, %29 : vector<8x16x4xf32>
    %c1_i32 = arith.constant 1 : i32
    %31 = arith.addi %0, %c1_i32 : i32
    %c0_11 = arith.constant 0 : index
    %32 = arith.index_cast %31 : i32 to index
    %c0_12 = arith.constant 0 : index
    %c0_13 = arith.constant 0 : index
    %33 = vector.load %arg2[%c0_11, %32, %c0_12, %c0_13] : memref<1x18x18x4xf32, #tpu.memory_space<vmem>>, vector<1x8x16x4xf32>
    %34 = vector.shape_cast %33 : vector<1x8x16x4xf32> to vector<8x16x4xf32>
    %35 = vector.extract_strided_slice %1 {offsets = [1, 0, 0], sizes = [1, 1, 4], strides = [1, 1, 1]} : vector<3x3x4xf32> to vector<1x1x4xf32>
    %36 = vector.shape_cast %35 : vector<1x1x4xf32> to vector<4xf32>
    %37 = vector.shape_cast %36 : vector<4xf32> to vector<1x1x4xf32>
    %38 = vector.broadcast %37 : vector<1x1x4xf32> to vector<8x16x4xf32>
    %39 = arith.mulf %34, %38 : vector<8x16x4xf32>
    %40 = arith.addf %30, %39 : vector<8x16x4xf32>
    %c1_i32_14 = arith.constant 1 : i32
    %41 = arith.addi %0, %c1_i32_14 : i32
    %c0_15 = arith.constant 0 : index
    %42 = arith.index_cast %41 : i32 to index
    %c1_16 = arith.constant 1 : index
    %c0_17 = arith.constant 0 : index
    %43 = vector.load %arg2[%c0_15, %42, %c1_16, %c0_17] : memref<1x18x18x4xf32, #tpu.memory_space<vmem>>, vector<1x8x16x4xf32>
    %44 = vector.shape_cast %43 : vector<1x8x16x4xf32> to vector<8x16x4xf32>
    %45 = vector.extract_strided_slice %1 {offsets = [1, 1, 0], sizes = [1, 1, 4], strides = [1, 1, 1]} : vector<3x3x4xf32> to vector<1x1x4xf32>
    %46 = vector.shape_cast %45 : vector<1x1x4xf32> to vector<4xf32>
    %47 = vector.shape_cast %46 : vector<4xf32> to vector<1x1x4xf32>
    %48 = vector.broadcast %47 : vector<1x1x4xf32> to vector<8x16x4xf32>
    %49 = arith.mulf %44, %48 : vector<8x16x4xf32>
    %50 = arith.addf %40, %49 : vector<8x16x4xf32>
    %c1_i32_18 = arith.constant 1 : i32
    %51 = arith.addi %0, %c1_i32_18 : i32
    %c0_19 = arith.constant 0 : index
    %52 = arith.index_cast %51 : i32 to index
    %c2_20 = arith.constant 2 : index
    %c0_21 = arith.constant 0 : index
    %53 = vector.load %arg2[%c0_19, %52, %c2_20, %c0_21] : memref<1x18x18x4xf32, #tpu.memory_space<vmem>>, vector<1x8x16x4xf32>
    %54 = vector.shape_cast %53 : vector<1x8x16x4xf32> to vector<8x16x4xf32>
    %55 = vector.extract_strided_slice %1 {offsets = [1, 2, 0], sizes = [1, 1, 4], strides = [1, 1, 1]} : vector<3x3x4xf32> to vector<1x1x4xf32>
    %56 = vector.shape_cast %55 : vector<1x1x4xf32> to vector<4xf32>
    %57 = vector.shape_cast %56 : vector<4xf32> to vector<1x1x4xf32>
    %58 = vector.broadcast %57 : vector<1x1x4xf32> to vector<8x16x4xf32>
    %59 = arith.mulf %54, %58 : vector<8x16x4xf32>
    %60 = arith.addf %50, %59 : vector<8x16x4xf32>
    %c2_i32 = arith.constant 2 : i32
    %61 = arith.addi %0, %c2_i32 : i32
    %c0_22 = arith.constant 0 : index
    %62 = arith.index_cast %61 : i32 to index
    %c0_23 = arith.constant 0 : index
    %c0_24 = arith.constant 0 : index
    %63 = vector.load %arg2[%c0_22, %62, %c0_23, %c0_24] : memref<1x18x18x4xf32, #tpu.memory_space<vmem>>, vector<1x8x16x4xf32>
    %64 = vector.shape_cast %63 : vector<1x8x16x4xf32> to vector<8x16x4xf32>
    %65 = vector.extract_strided_slice %1 {offsets = [2, 0, 0], sizes = [1, 1, 4], strides = [1, 1, 1]} : vector<3x3x4xf32> to vector<1x1x4xf32>
    %66 = vector.shape_cast %65 : vector<1x1x4xf32> to vector<4xf32>
    %67 = vector.shape_cast %66 : vector<4xf32> to vector<1x1x4xf32>
    %68 = vector.broadcast %67 : vector<1x1x4xf32> to vector<8x16x4xf32>
    %69 = arith.mulf %64, %68 : vector<8x16x4xf32>
    %70 = arith.addf %60, %69 : vector<8x16x4xf32>
    %c2_i32_25 = arith.constant 2 : i32
    %71 = arith.addi %0, %c2_i32_25 : i32
    %c0_26 = arith.constant 0 : index
    %72 = arith.index_cast %71 : i32 to index
    %c1_27 = arith.constant 1 : index
    %c0_28 = arith.constant 0 : index
    %73 = vector.load %arg2[%c0_26, %72, %c1_27, %c0_28] : memref<1x18x18x4xf32, #tpu.memory_space<vmem>>, vector<1x8x16x4xf32>
    %74 = vector.shape_cast %73 : vector<1x8x16x4xf32> to vector<8x16x4xf32>
    %75 = vector.extract_strided_slice %1 {offsets = [2, 1, 0], sizes = [1, 1, 4], strides = [1, 1, 1]} : vector<3x3x4xf32> to vector<1x1x4xf32>
    %76 = vector.shape_cast %75 : vector<1x1x4xf32> to vector<4xf32>
    %77 = vector.shape_cast %76 : vector<4xf32> to vector<1x1x4xf32>
    %78 = vector.broadcast %77 : vector<1x1x4xf32> to vector<8x16x4xf32>
    %79 = arith.mulf %74, %78 : vector<8x16x4xf32>
    %80 = arith.addf %70, %79 : vector<8x16x4xf32>
    %c2_i32_29 = arith.constant 2 : i32
    %81 = arith.addi %0, %c2_i32_29 : i32
    %c0_30 = arith.constant 0 : index
    %82 = arith.index_cast %81 : i32 to index
    %c2_31 = arith.constant 2 : index
    %c0_32 = arith.constant 0 : index
    %83 = vector.load %arg2[%c0_30, %82, %c2_31, %c0_32] : memref<1x18x18x4xf32, #tpu.memory_space<vmem>>, vector<1x8x16x4xf32>
    %84 = vector.shape_cast %83 : vector<1x8x16x4xf32> to vector<8x16x4xf32>
    %85 = vector.extract_strided_slice %1 {offsets = [2, 2, 0], sizes = [1, 1, 4], strides = [1, 1, 1]} : vector<3x3x4xf32> to vector<1x1x4xf32>
    %86 = vector.shape_cast %85 : vector<1x1x4xf32> to vector<4xf32>
    %87 = vector.shape_cast %86 : vector<4xf32> to vector<1x1x4xf32>
    %88 = vector.broadcast %87 : vector<1x1x4xf32> to vector<8x16x4xf32>
    %89 = arith.mulf %84, %88 : vector<8x16x4xf32>
    %90 = arith.addf %80, %89 : vector<8x16x4xf32>
    %91 = vector.shape_cast %90 : vector<8x16x4xf32> to vector<128x4xf32>
    %c0_33 = arith.constant 0 : index
    %c0_34 = arith.constant 0 : index
    %92 = vector.load %arg4[%c0_33, %c0_34] : memref<8x4xf32, #tpu.memory_space<vmem>>, vector<8x4xf32>
    %cst = arith.constant dense<0.000000e+00> : vector<8x128xf32>
    %93 = tpu.matmul %92, %91, %cst {dimension_numbers = #tpu.dot_dimension_numbers<[1], [1], [0], [0], [0, 0, 1, 0], [], []>} : vector<8x4xf32>, vector<128x4xf32>, vector<8x128xf32> -> vector<8x128xf32>
    %c0_35 = arith.constant 0 : index
    %c0_36 = arith.constant 0 : index
    %c0_37 = arith.constant 0 : index
    %94 = vector.load %arg5[%c0_35, %c0_36, %c0_37] : memref<1x8x128xf32, #tpu.memory_space<vmem>>, vector<1x8x128xf32>
    %95 = vector.shape_cast %94 : vector<1x8x128xf32> to vector<8x128xf32>
    %96 = vector.shape_cast %93 : vector<8x128xf32> to vector<1x8x128xf32>
    tpu.vector_store %arg5[%c0_35, %c0_36, %c0_37], %96 {strides = array<i32>} : memref<1x8x128xf32, #tpu.memory_space<vmem>>, vector<1x8x128xf32>,
    %cst_38 = arith.constant dense<0.000000e+00> : vector<8xf32>
    %97 = vector.multi_reduction <add>, %93, %cst_38 [1] : vector<8x128xf32> to vector<8xf32>
    %98 = vector.shape_cast %97 : vector<8xf32> to vector<8x1xf32>
    %c0_39 = arith.constant 0 : index
    %c0_40 = arith.constant 0 : index
    %c0_41 = arith.constant 0 : index
    %99 = vector.load %arg6[%c0_39, %c0_40, %c0_41] : memref<1x8x1xf32, #tpu.memory_space<vmem>>, vector<1x8x1xf32>
    %100 = vector.shape_cast %99 : vector<1x8x1xf32> to vector<8x1xf32>
    %101 = vector.shape_cast %98 : vector<8x1xf32> to vector<1x8x1xf32>
    tpu.vector_store %arg6[%c0_39, %c0_40, %c0_41], %101 {strides = array<i32>} : memref<1x8x1xf32, #tpu.memory_space<vmem>>, vector<1x8x1xf32>,
    %102 = arith.mulf %93, %93 : vector<8x128xf32>
    %cst_42 = arith.constant dense<0.000000e+00> : vector<8xf32>
    %103 = vector.multi_reduction <add>, %102, %cst_42 [1] : vector<8x128xf32> to vector<8xf32>
    %104 = vector.shape_cast %103 : vector<8xf32> to vector<8x1xf32>
    %c0_43 = arith.constant 0 : index
    %c0_44 = arith.constant 0 : index
    %c0_45 = arith.constant 0 : index
    %105 = vector.load %arg7[%c0_43, %c0_44, %c0_45] : memref<1x8x1xf32, #tpu.memory_space<vmem>>, vector<1x8x1xf32>
    %106 = vector.shape_cast %105 : vector<1x8x1xf32> to vector<8x1xf32>
    %107 = vector.shape_cast %104 : vector<8x1xf32> to vector<1x8x1xf32>
    tpu.vector_store %arg7[%c0_43, %c0_44, %c0_45], %107 {strides = array<i32>} : memref<1x8x1xf32, #tpu.memory_space<vmem>>, vector<1x8x1xf32>,
    return
  }
  func.func @transform_0(%arg0: i32, %arg1: i32) -> (i32, i32, i32, i32) {
    %c0_i32 = arith.constant 0 : i32
    %c0_i32_0 = arith.constant 0 : i32
    %c0_i32_1 = arith.constant 0 : i32
    %c0_i32_2 = arith.constant 0 : i32
    return %arg0, %c0_i32, %c0_i32_0, %c0_i32_1 : i32, i32, i32, i32
  }
  func.func @transform_1(%arg0: i32, %arg1: i32) -> (i32, i32, i32) {
    %c0_i32 = arith.constant 0 : i32
    %c0_i32_0 = arith.constant 0 : i32
    %c0_i32_1 = arith.constant 0 : i32
    %c0_i32_2 = arith.constant 0 : i32
    return %c0_i32, %c0_i32_0, %c0_i32_1 : i32, i32, i32
  }
  func.func @transform_2(%arg0: i32, %arg1: i32) -> (i32, i32) {
    %c0_i32 = arith.constant 0 : i32
    %c0_i32_0 = arith.constant 0 : i32
    %c0_i32_1 = arith.constant 0 : i32
    return %c0_i32, %c0_i32_0 : i32, i32
  }
  func.func @transform_3(%arg0: i32, %arg1: i32) -> (i32, i32, i32) {
    %c0_i32 = arith.constant 0 : i32
    %c0_i32_0 = arith.constant 0 : i32
    return %arg0, %c0_i32, %arg1 : i32, i32, i32
  }
  func.func @transform_4(%arg0: i32, %arg1: i32) -> (i32, i32, i32) {
    %c2_i32 = arith.constant 2 : i32
    %0 = arith.muli %arg0, %c2_i32 : i32
    %1 = arith.addi %0, %arg1 : i32
    %c0_i32 = arith.constant 0 : i32
    %c0_i32_0 = arith.constant 0 : i32
    %c0_i32_1 = arith.constant 0 : i32
    return %1, %c0_i32, %c0_i32_0 : i32, i32, i32
  }
  func.func @transform_5(%arg0: i32, %arg1: i32) -> (i32, i32, i32) {
    %c2_i32 = arith.constant 2 : i32
    %0 = arith.muli %arg0, %c2_i32 : i32
    %1 = arith.addi %0, %arg1 : i32
    %c0_i32 = arith.constant 0 : i32
    %c0_i32_0 = arith.constant 0 : i32
    %c0_i32_1 = arith.constant 0 : i32
    return %1, %c0_i32, %c0_i32_0 : i32, i32, i32
  }
}

</mosaic_0001>

<llo_original>
// kernel: tpu_custom_call.1
$region0: #{tpu_custom_call.1}
  #allocation0 [shape = 'u32[]', space=smem, size = 0x4, offset = 0x4, fixed_abs, tag = 'smem constant byte address 0x4 - core index']
  #allocation1 [shape = 'u32[72,128]{1,0:T(1,128)}', space=vmem, size = 0x9000, scoped, tag = 'internal scratch']
  %s0 = inlined_call_operand.vmem [shape: f32[2,18,18,4], index: 0, kind: input, shape index: {}]
  %s1 = inlined_call_operand.vmem [shape: f32[3,3,4], index: 1, kind: input, shape index: {}]
  %s2 = inlined_call_operand.vmem [shape: f32[8,4], index: 2, kind: input, shape index: {}]
  %s3 = inlined_call_operand.hbm [shape: f32[2,8,256], index: 3, kind: output, shape index: {0}]
  %s4 = inlined_call_operand.vmem [shape: f32[4,8,1], index: 4, kind: output, shape index: {1}]
  %s5 = inlined_call_operand.vmem [shape: f32[4,8,1], index: 5, kind: output, shape index: {2}]
  %6 = xla_tuple %s3, %s4, %s5
  %s7 = sld [smem:[#allocation0]]
  $region61: #{tpu_custom_call.1} parent=0
    _
  %s9 = ssub.s32 1, %s7
  %s10 = scalar_select 0, %s9, %s7
  $region1: #{tpu_custom_call.1} parent=0
    #allocation2 [shape = 'u8[8192]{0}', space=vmem, size = 0x2000, scoped, tag = 'output window, operand 0']
    #allocation3 [shape = 's32[2]{0}', space=sflag, size = 0x8, scoped, tag = 'scoped memory for tpu_custom_call.1']
    %11 = vsyncpa [#allocation3], 0
    %s12 = scalar_lea.sflag [#allocation3], 1
    %13 = vsyncpa %s12, 0
    loop: start=0, step=1, limit=6
    $region2: #{tpu_custom_call.1} parent=1 // loop_pre_header
      _
    $region3: #{tpu_custom_call.1} parent=1 // loop_header
      %s15 = sphi 0, %s19
      %p16 = scmp.ge.s32.totalorder %s15, 6
      %s22 = sphi 0, %s34
      %s23 = sphi 0, %s30
      %s24 = sphi 0, %s22
      %s25 = sphi 0, %s23
      %s26 = sphi 0, %s24
      %s27 = sphi 0, %s25
      %s37 = sphi 0, %s39
      %s40 = sphi 0, %s37
      %s41 = sphi 0, %s40
      %s57 = sphi 0, %s41
      %s61 = sphi 0, %s61
      %s63 = sphi 0, %s61
      %s64 = sphi 0, %s63
      %s78 = sphi 0, %s64
      %s82 = sphi 0, %s82
      %s84 = sphi 0, %s82
      %s85 = sphi 0, %s84
      %s99 = sphi 0, %s85
      %s107 = sphi 0, %s109
      %s110 = sphi 0, %s107
      %s111 = sphi 0, %s110
      %s127 = sphi 0, %s111
      %s137 = sphi 0, %s139
      %s140 = sphi 0, %s137
      %s141 = sphi 0, %s140
      %s157 = sphi 0, %s141
      %s167 = sphi 0, %s169
      %s170 = sphi 0, %s167
      %s171 = sphi 0, %s170
      %s187 = sphi 0, %s171
    $region4: #{tpu_custom_call.1} parent=1 // loop_header_branch
      %18 = sbr.rel (%p16) target = $region8
    $region5: #{tpu_custom_call.1} parent=1 // loop_body
      %s20 = ssub.s32 %s15, 1
      %s21 = ssub.s32 %s15, 2
      %s28 = sadd.s32 1, %s23
      %p29 = scmp.ge.s32.totalorder %s28, 2
      %s30 = scalar_select %p29, 0, %s28
      %s31 = sadd.s32 1, %s22
      %s32 = scalar_select %p29, %s31, %s22
      %p33 = scmp.ge.s32.totalorder %s32, 2
      %s34 = scalar_select %p33, 0, %s32
      %s35 = ssub.s32 %s22, %s34
      %p36 = scmp.eq.s32.totalorder %s35, 0
      %s38 = sadd.s32 %s37, 1
      %s39 = scalar_select %p36, %s37, %s38
      %p42 = pneg %p36
      %p43 = scmp.eq.s32.totalorder %s15, 3
      %p44 = por %p42, %p43
      %p45 = scmp.ne.s32.totalorder %s37, %s40
      %p46 = scmp.eq.s32.totalorder %s15, 0
      %p47 = por %p45, %p46
      %p48 = scmp.ne.s32.totalorder %s37, %s40
      %p49 = scmp.eq.s32.totalorder %s20, 3
      %p50 = por %p48, %p49
      %p51 = scmp.ne.s32.totalorder %s40, %s41
      %p52 = scmp.eq.s32.totalorder %s20, 0
      %p53 = por %p51, %p52
      %p54 = scmp.ne.s32.totalorder %s40, %s41
      %p55 = scmp.eq.s32.totalorder %s21, 3
      %p56 = por %p54, %p55
      %p58 = scmp.ne.s32.totalorder %s41, %s57
      %p59 = scmp.eq.s32.totalorder %s21, 0
      %p60 = por %p58, %p59
      %s62 = sadd.s32 %s61, 1
      %p65 = scmp.eq.s32.totalorder %s15, 3
      %p66 = scmp.ne.s32.totalorder %s61, %s63
      %p67 = scmp.eq.s32.totalorder %s15, 0
      %p68 = por %p66, %p67
      %p69 = scmp.ne.s32.totalorder %s61, %s63
      %p70 = scmp.eq.s32.totalorder %s20, 3
      %p71 = por %p69, %p70
      %p72 = scmp.ne.s32.totalorder %s63, %s64
      %p73 = scmp.eq.s32.totalorder %s20, 0
      %p74 = por %p72, %p73
      %p75 = scmp.ne.s32.totalorder %s63, %s64
      %p76 = scmp.eq.s32.totalorder %s21, 3
      %p77 = por %p75, %p76
      %p79 = scmp.ne.s32.totalorder %s64, %s78
      %p80 = scmp.eq.s32.totalorder %s21, 0
      %p81 = por %p79, %p80
      %s83 = sadd.s32 %s82, 1
      %p86 = scmp.eq.s32.totalorder %s15, 3
      %p87 = scmp.ne.s32.totalorder %s82, %s84
      %p88 = scmp.eq.s32.totalorder %s15, 0
      %p89 = por %p87, %p88
      %p90 = scmp.ne.s32.totalorder %s82, %s84
      %p91 = scmp.eq.s32.totalorder %s20, 3
      %p92 = por %p90, %p91
      %p93 = scmp.ne.s32.totalorder %s84, %s85
      %p94 = scmp.eq.s32.totalorder %s20, 0
      %p95 = por %p93, %p94
      %p96 = scmp.ne.s32.totalorder %s84, %s85
      %p97 = scmp.eq.s32.totalorder %s21, 3
      %p98 = por %p96, %p97
      %p100 = scmp.ne.s32.totalorder %s85, %s99
      %p101 = scmp.eq.s32.totalorder %s21, 0
      %p102 = por %p100, %p101
      %s103 = ssub.s32 %s22, %s34
      %s104 = ssub.s32 %s23, %s30
      %s105 = sor.u32 %s103, %s104
      %p106 = scmp.eq.s32.totalorder %s105, 0
      %s108 = sadd.s32 %s107, 1
      %s109 = scalar_select %p106, %s107, %s108
      %p112 = pneg %p106
      %p113 = scmp.eq.s32.totalorder %s15, 3
      %p114 = por %p112, %p113
      %p115 = scmp.ne.s32.totalorder %s107, %s110
      %p116 = scmp.eq.s32.totalorder %s15, 0
      %p117 = por %p115, %p116
      %p118 = scmp.ne.s32.totalorder %s107, %s110
      %p119 = scmp.eq.s32.totalorder %s20, 3
      %p120 = por %p118, %p119
      %p121 = scmp.ne.s32.totalorder %s110, %s111
      %p122 = scmp.eq.s32.totalorder %s20, 0
      %p123 = por %p121, %p122
      %p124 = scmp.ne.s32.totalorder %s110, %s111
      %p125 = scmp.eq.s32.totalorder %s21, 3
      %p126 = por %p124, %p125
      %p128 = scmp.ne.s32.totalorder %s111, %s127
      %p129 = scmp.eq.s32.totalorder %s21, 0
      %p130 = por %p128, %p129
      %s131 = smul.u32 %s22, 2
      %s132 = sadd.s32 %s131, %s23
      %s133 = smul.u32 %s34, 2
      %s134 = sadd.s32 %s133, %s30
      %s135 = ssub.s32 %s132, %s134
      %p136 = scmp.eq.s32.totalorder %s135, 0
      %s138 = sadd.s32 %s137, 1
      %s139 = scalar_select %p136, %s137, %s138
      %p142 = pneg %p136
      %p143 = scmp.eq.s32.totalorder %s15, 3
      %p144 = por %p142, %p143
      %p145 = scmp.ne.s32.totalorder %s137, %s140
      %p146 = scmp.eq.s32.totalorder %s15, 0
      %p147 = por %p145, %p146
      %p148 = scmp.ne.s32.totalorder %s137, %s140
      %p149 = scmp.eq.s32.totalorder %s20, 3
      %p150 = por %p148, %p149
      %p151 = scmp.ne.s32.totalorder %s140, %s141
      %p152 = scmp.eq.s32.totalorder %s20, 0
      %p153 = por %p151, %p152
      %p154 = scmp.ne.s32.totalorder %s140, %s141
      %p155 = scmp.eq.s32.totalorder %s21, 3
      %p156 = por %p154, %p155
      %p158 = scmp.ne.s32.totalorder %s141, %s157
      %p159 = scmp.eq.s32.totalorder %s21, 0
      %p160 = por %p158, %p159
      %s161 = smul.u32 %s22, 2
      %s162 = sadd.s32 %s161, %s23
      %s163 = smul.u32 %s34, 2
      %s164 = sadd.s32 %s163, %s30
      %s165 = ssub.s32 %s162, %s164
      %p166 = scmp.eq.s32.totalorder %s165, 0
      %s168 = sadd.s32 %s167, 1
      %s169 = scalar_select %p166, %s167, %s168
      %p172 = pneg %p166
      %p173 = scmp.eq.s32.totalorder %s15, 3
      %p174 = por %p172, %p173
      %p175 = scmp.ne.s32.totalorder %s167, %s170
      %p176 = scmp.eq.s32.totalorder %s15, 0
      %p177 = por %p175, %p176
      %p178 = scmp.ne.s32.totalorder %s167, %s170
      %p179 = scmp.eq.s32.totalorder %s20, 3
      %p180 = por %p178, %p179
      %p181 = scmp.ne.s32.totalorder %s170, %s171
      %p182 = scmp.eq.s32.totalorder %s20, 0
      %p183 = por %p181, %p182
      %p184 = scmp.ne.s32.totalorder %s170, %s171
      %p185 = scmp.eq.s32.totalorder %s21, 3
      %p186 = por %p184, %p185
      %p188 = scmp.ne.s32.totalorder %s171, %s187
      %p189 = scmp.eq.s32.totalorder %s21, 0
      %p190 = por %p188, %p189
      %p191 = scmp.le.s32.totalorder 1, %s15
      %p192 = scmp.lt.s32.totalorder %s15, 5
      %p193 = pnand %p191, %p192
      %p194 = pneg %p193
      // Predicated region
      $region9: #{tpu_custom_call.1} parent=5 // pred_check
        _
      $region10: #{tpu_custom_call.1} parent=5 // pred_check_branch
        %196 = sbr.rel (%p193) target = $region12
      $region11: #{tpu_custom_call.1} parent=5 // pred_region
        %s197 = ssub.s32 %s15, 1
        // Predicated region
        $region13: #{tpu_custom_call.1} parent=11 // pred_check
          %p198 = pneg %p74
        $region14: #{tpu_custom_call.1} parent=11 // pred_check_branch
          %200 = sbr.rel (%p198) target = $region16
        $region15: #{tpu_custom_call.1} parent=11 // pred_region
          _
        $region16: #{tpu_custom_call.1} parent=11 // pred_fallthru
          _
        // Predicated region
        $region17: #{tpu_custom_call.1} parent=11 // pred_check
          %p201 = pneg %p95
        $region18: #{tpu_custom_call.1} parent=11 // pred_check_branch
          %203 = sbr.rel (%p201) target = $region20
        $region19: #{tpu_custom_call.1} parent=11 // pred_region
          _
        $region20: #{tpu_custom_call.1} parent=11 // pred_fallthru
          _
      $region12: #{tpu_custom_call.1} parent=5 // pred_fallthru
        _
      %p204 = scmp.lt.s32.totalorder %s15, 4
      // Predicated region
      $region21: #{tpu_custom_call.1} parent=5 // pred_check
        %p205 = pneg %p204
      $region22: #{tpu_custom_call.1} parent=5 // pred_check_branch
        %207 = sbr.rel (%p205) target = $region24
      $region23: #{tpu_custom_call.1} parent=5 // pred_region
        // Predicated region
        $region25: #{tpu_custom_call.1} parent=23 // pred_check
          %p208 = pneg %p47
        $region26: #{tpu_custom_call.1} parent=23 // pred_check_branch
          %210 = sbr.rel (%p208) target = $region28
        $region27: #{tpu_custom_call.1} parent=23 // pred_region
          %p211 = scmp.lt.s32.totalorder %s22, 1
          %s212 = scalar_select %p211, %s22, 1
          %s213 = smul.addr %s212, 54
          %s214 = smul.addr %s213, 8
          %s215 = scalar_lea.vmem %s0, %s214
        $region28: #{tpu_custom_call.1} parent=23 // pred_fallthru
          _
      $region24: #{tpu_custom_call.1} parent=5 // pred_fallthru
        _
      %p216 = scmp.le.s32.totalorder 1, %s15
      %p217 = scmp.lt.s32.totalorder %s15, 5
      %p218 = pnand %p216, %p217
      %p219 = pneg %p218
      // Predicated region
      $region29: #{tpu_custom_call.1} parent=5 // pred_check
        _
      $region30: #{tpu_custom_call.1} parent=5 // pred_check_branch
        %221 = sbr.rel (%p218) target = $region32
      $region31: #{tpu_custom_call.1} parent=5 // pred_region
        %s222 = ssub.s32 %s15, 1
        %p223 = scmp.lt.s32.totalorder %s24, 1
        %s224 = scalar_select %p223, %s24, 1
        %s225 = smul.addr %s224, 54
        %s226 = smul.addr %s225, 8
        %s227 = scalar_lea.vmem %s0, %s226
        %p228 = pneg %p53
        %p229 = pneg %p50
        %p230 = pneg %p74
        %p231 = pneg %p71
        %p232 = pneg %p95
        %p233 = pneg %p92
        %p234 = pneg %p123
        %p235 = pneg %p120
        %s236 = sand.u32 %s110, 1
        %s237 = scalar_lea.sflag [#allocation3], %s236
        %s238 = sand.u32 %s110, 1
        %s239 = smul.addr %s238, 8
        %s240 = scalar_lea.vmem [#allocation2], %s239
        %p241 = pneg %p153
        %p242 = pneg %p150
        %s243 = smul.u32 %s24, 2
        %s244 = sadd.s32 %s243, %s25
        %p245 = scmp.lt.s32.totalorder %s244, 3
        %s246 = scalar_select %p245, %s244, 3
        %s247 = smul.addr %s246, 8
        %s248 = scalar_lea.vmem %s4, %s247
        %p249 = pneg %p183
        %p250 = pneg %p180
        %s251 = smul.u32 %s24, 2
        %s252 = sadd.s32 %s251, %s25
        %p253 = scmp.lt.s32.totalorder %s252, 3
        %s254 = scalar_select %p253, %s252, 3
        %s255 = smul.addr %s254, 8
        %s256 = scalar_lea.vmem %s5, %s255
        %p257 = scmp.lt.s32.totalorder %s24, 1
        %s258 = scalar_select %p257, %s24, 1
        %s259 = smul.addr %s258, 54
        %s260 = smul.addr %s259, 8
        %s261 = scalar_lea.vmem %s0, %s260
        %s262 = smul.u32 %s24, 2
        %s263 = sadd.s32 %s262, %s25
        %p264 = scmp.lt.s32.totalorder %s263, 3
        %s265 = scalar_select %p264, %s263, 3
        %s266 = smul.addr %s265, 8
        %s267 = scalar_lea.vmem %s4, %s266
        %s268 = smul.u32 %s24, 2
        %s269 = sadd.s32 %s268, %s25
        %s270 = smul.u32 %s24, 2
        %s271 = sadd.s32 %s270, %s25
        %p272 = scmp.lt.s32.totalorder %s271, 3
        %s273 = scalar_select %p272, %s271, 3
        %s274 = smul.addr %s273, 8
        %s275 = scalar_lea.vmem %s5, %s274
        %s276 = smul.u32 %s24, 2
        %s277 = sadd.s32 %s276, %s25
        %s278 = smul.u32 %s25, 8
        %v279 = vld [vmem:[%s1] sm:$0x7]
        %v280 = vld [vmem:[%s1 + $0x4] sm:$0x7]
        %v281 = vld [vmem:[%s1 + $0x8] sm:$0x7]
        %s282 = smul.u32 %s278, 24
        %s283 = scalar_lea.vmem %s261, %s282
        %v284 = vld [vmem:[%s283] sm:$0xff]
        %v285 = vld [vmem:[%s283 + $0x8] sm:$0xff]
        %v286 = vld [vmem:[%s283 + $0x18] sm:$0xff]
        %v287 = vld [vmem:[%s283 + $0x20] sm:$0xff]
        %v288 = vld [vmem:[%s283 + $0x30] sm:$0xff]
        %v289 = vld [vmem:[%s283 + $0x38] sm:$0xff]
        %v290 = vld [vmem:[%s283 + $0x48] sm:$0xff]
        %v291 = vld [vmem:[%s283 + $0x50] sm:$0xff]
        %v292 = vld [vmem:[%s283 + $0x60] sm:$0xff]
        %v293 = vld [vmem:[%s283 + $0x68] sm:$0xff]
        %v294 = vld [vmem:[%s283 + $0x78] sm:$0xff]
        %v295 = vld [vmem:[%s283 + $0x80] sm:$0xff]
        %v296 = vld [vmem:[%s283 + $0x90] sm:$0xff]
        %v297 = vld [vmem:[%s283 + $0x98] sm:$0xff]
        %v298 = vld [vmem:[%s283 + $0xa8] sm:$0xff]
        %v299 = vld [vmem:[%s283 + $0xb0] sm:$0xff]
        %v300 = vperm.slane %v279, 0
        %v301 = vmul.f32 %v284, %v300
        %v302 = vmul.f32 %v285, %v300
        %v303 = vmul.f32 %v286, %v300
        %v304 = vmul.f32 %v287, %v300
        %v305 = vmul.f32 %v288, %v300
        %v306 = vmul.f32 %v289, %v300
        %v307 = vmul.f32 %v290, %v300
        %v308 = vmul.f32 %v291, %v300
        %v309 = vmul.f32 %v292, %v300
        %v310 = vmul.f32 %v293, %v300
        %v311 = vmul.f32 %v294, %v300
        %v312 = vmul.f32 %v295, %v300
        %v313 = vmul.f32 %v296, %v300
        %v314 = vmul.f32 %v297, %v300
        %v315 = vmul.f32 %v298, %v300
        %v316 = vmul.f32 %v299, %v300
        %v317 = vld [vmem:[%s283 + $0x1] sm:$0xff]
        %v318 = vld [vmem:[%s283 + $0x9] sm:$0xff]
        %v319 = vld [vmem:[%s283 + $0x19] sm:$0xff]
        %v320 = vld [vmem:[%s283 + $0x21] sm:$0xff]
        %v321 = vld [vmem:[%s283 + $0x31] sm:$0xff]
        %v322 = vld [vmem:[%s283 + $0x39] sm:$0xff]
        %v323 = vld [vmem:[%s283 + $0x49] sm:$0xff]
        %v324 = vld [vmem:[%s283 + $0x51] sm:$0xff]
        %v325 = vld [vmem:[%s283 + $0x61] sm:$0xff]
        %v326 = vld [vmem:[%s283 + $0x69] sm:$0xff]
        %v327 = vld [vmem:[%s283 + $0x79] sm:$0xff]
        %v328 = vld [vmem:[%s283 + $0x81] sm:$0xff]
        %v329 = vld [vmem:[%s283 + $0x91] sm:$0xff]
        %v330 = vld [vmem:[%s283 + $0x99] sm:$0xff]
        %v331 = vld [vmem:[%s283 + $0xa9] sm:$0xff]
        %v332 = vld [vmem:[%s283 + $0xb1] sm:$0xff]
        %v333 = vperm.slane %v279, 1
        %v334 = vmul.f32 %v317, %v333
        %v335 = vmul.f32 %v318, %v333
        %v336 = vmul.f32 %v319, %v333
        %v337 = vmul.f32 %v320, %v333
        %v338 = vmul.f32 %v321, %v333
        %v339 = vmul.f32 %v322, %v333
        %v340 = vmul.f32 %v323, %v333
        %v341 = vmul.f32 %v324, %v333
        %v342 = vmul.f32 %v325, %v333
        %v343 = vmul.f32 %v326, %v333
        %v344 = vmul.f32 %v327, %v333
        %v345 = vmul.f32 %v328, %v333
        %v346 = vmul.f32 %v329, %v333
        %v347 = vmul.f32 %v330, %v333
        %v348 = vmul.f32 %v331, %v333
        %v349 = vmul.f32 %v332, %v333
        %v350 = vadd.f32 %v301, %v334
        %v351 = vadd.f32 %v302, %v335
        %v352 = vadd.f32 %v303, %v336
        %v353 = vadd.f32 %v304, %v337
        %v354 = vadd.f32 %v305, %v338
        %v355 = vadd.f32 %v306, %v339
        %v356 = vadd.f32 %v307, %v340
        %v357 = vadd.f32 %v308, %v341
        %v358 = vadd.f32 %v309, %v342
        %v359 = vadd.f32 %v310, %v343
        %v360 = vadd.f32 %v311, %v344
        %v361 = vadd.f32 %v312, %v345
        %v362 = vadd.f32 %v313, %v346
        %v363 = vadd.f32 %v314, %v347
        %v364 = vadd.f32 %v315, %v348
        %v365 = vadd.f32 %v316, %v349
        %v366 = vld [vmem:[%s283 + $0x2] sm:$0xff]
        %v367 = vld [vmem:[%s283 + $0xa] sm:$0xff]
        %v368 = vld [vmem:[%s283 + $0x1a] sm:$0xff]
        %v369 = vld [vmem:[%s283 + $0x22] sm:$0xff]
        %v370 = vld [vmem:[%s283 + $0x32] sm:$0xff]
        %v371 = vld [vmem:[%s283 + $0x3a] sm:$0xff]
        %v372 = vld [vmem:[%s283 + $0x4a] sm:$0xff]
        %v373 = vld [vmem:[%s283 + $0x52] sm:$0xff]
        %v374 = vld [vmem:[%s283 + $0x62] sm:$0xff]
        %v375 = vld [vmem:[%s283 + $0x6a] sm:$0xff]
        %v376 = vld [vmem:[%s283 + $0x7a] sm:$0xff]
        %v377 = vld [vmem:[%s283 + $0x82] sm:$0xff]
        %v378 = vld [vmem:[%s283 + $0x92] sm:$0xff]
        %v379 = vld [vmem:[%s283 + $0x9a] sm:$0xff]
        %v380 = vld [vmem:[%s283 + $0xaa] sm:$0xff]
        %v381 = vld [vmem:[%s283 + $0xb2] sm:$0xff]
        %v382 = vperm.slane %v279, 2
        %v383 = vmul.f32 %v366, %v382
        %v384 = vmul.f32 %v367, %v382
        %v385 = vmul.f32 %v368, %v382
        %v386 = vmul.f32 %v369, %v382
        %v387 = vmul.f32 %v370, %v382
        %v388 = vmul.f32 %v371, %v382
        %v389 = vmul.f32 %v372, %v382
        %v390 = vmul.f32 %v373, %v382
        %v391 = vmul.f32 %v374, %v382
        %v392 = vmul.f32 %v375, %v382
        %v393 = vmul.f32 %v376, %v382
        %v394 = vmul.f32 %v377, %v382
        %v395 = vmul.f32 %v378, %v382
        %v396 = vmul.f32 %v379, %v382
        %v397 = vmul.f32 %v380, %v382
        %v398 = vmul.f32 %v381, %v382
        %v399 = vadd.f32 %v350, %v383
        %v400 = vadd.f32 %v351, %v384
        %v401 = vadd.f32 %v352, %v385
        %v402 = vadd.f32 %v353, %v386
        %v403 = vadd.f32 %v354, %v387
        %v404 = vadd.f32 %v355, %v388
        %v405 = vadd.f32 %v356, %v389
        %v406 = vadd.f32 %v357, %v390
        %v407 = vadd.f32 %v358, %v391
        %v408 = vadd.f32 %v359, %v392
        %v409 = vadd.f32 %v360, %v393
        %v410 = vadd.f32 %v361, %v394
        %v411 = vadd.f32 %v362, %v395
        %v412 = vadd.f32 %v363, %v396
        %v413 = vadd.f32 %v364, %v397
        %v414 = vadd.f32 %v365, %v398
        %s415 = sadd.s32 %s278, 1
        %s416 = smul.u32 %s415, 24
        %s417 = scalar_lea.vmem %s261, %s416
        %v418 = vld [vmem:[%s417] sm:$0xff]
        %v419 = vld [vmem:[%s417 + $0x8] sm:$0xff]
        %v420 = vld [vmem:[%s417 + $0x18] sm:$0xff]
        %v421 = vld [vmem:[%s417 + $0x20] sm:$0xff]
        %v422 = vld [vmem:[%s417 + $0x30] sm:$0xff]
        %v423 = vld [vmem:[%s417 + $0x38] sm:$0xff]
        %v424 = vld [vmem:[%s417 + $0x48] sm:$0xff]
        %v425 = vld [vmem:[%s417 + $0x50] sm:$0xff]
        %v426 = vld [vmem:[%s417 + $0x60] sm:$0xff]
        %v427 = vld [vmem:[%s417 + $0x68] sm:$0xff]
        %v428 = vld [vmem:[%s417 + $0x78] sm:$0xff]
        %v429 = vld [vmem:[%s417 + $0x80] sm:$0xff]
        %v430 = vld [vmem:[%s417 + $0x90] sm:$0xff]
        %v431 = vld [vmem:[%s417 + $0x98] sm:$0xff]
        %v432 = vld [vmem:[%s417 + $0xa8] sm:$0xff]
        %v433 = vld [vmem:[%s417 + $0xb0] sm:$0xff]
        %v434 = vperm.slane %v280, 0
        %v435 = vmul.f32 %v418, %v434
        %v436 = vmul.f32 %v419, %v434
        %v437 = vmul.f32 %v420, %v434
        %v438 = vmul.f32 %v421, %v434
        %v439 = vmul.f32 %v422, %v434
        %v440 = vmul.f32 %v423, %v434
        %v441 = vmul.f32 %v424, %v434
        %v442 = vmul.f32 %v425, %v434
        %v443 = vmul.f32 %v426, %v434
        %v444 = vmul.f32 %v427, %v434
        %v445 = vmul.f32 %v428, %v434
        %v446 = vmul.f32 %v429, %v434
        %v447 = vmul.f32 %v430, %v434
        %v448 = vmul.f32 %v431, %v434
        %v449 = vmul.f32 %v432, %v434
        %v450 = vmul.f32 %v433, %v434
        %v451 = vadd.f32 %v399, %v435
        %v452 = vadd.f32 %v400, %v436
        %v453 = vadd.f32 %v401, %v437
        %v454 = vadd.f32 %v402, %v438
        %v455 = vadd.f32 %v403, %v439
        %v456 = vadd.f32 %v404, %v440
        %v457 = vadd.f32 %v405, %v441
        %v458 = vadd.f32 %v406, %v442
        %v459 = vadd.f32 %v407, %v443
        %v460 = vadd.f32 %v408, %v444
        %v461 = vadd.f32 %v409, %v445
        %v462 = vadd.f32 %v410, %v446
        %v463 = vadd.f32 %v411, %v447
        %v464 = vadd.f32 %v412, %v448
        %v465 = vadd.f32 %v413, %v449
        %v466 = vadd.f32 %v414, %v450
        %v467 = vld [vmem:[%s417 + $0x1] sm:$0xff]
        %v468 = vld [vmem:[%s417 + $0x9] sm:$0xff]
        %v469 = vld [vmem:[%s417 + $0x19] sm:$0xff]
        %v470 = vld [vmem:[%s417 + $0x21] sm:$0xff]
        %v471 = vld [vmem:[%s417 + $0x31] sm:$0xff]
        %v472 = vld [vmem:[%s417 + $0x39] sm:$0xff]
        %v473 = vld [vmem:[%s417 + $0x49] sm:$0xff]
        %v474 = vld [vmem:[%s417 + $0x51] sm:$0xff]
        %v475 = vld [vmem:[%s417 + $0x61] sm:$0xff]
        %v476 = vld [vmem:[%s417 + $0x69] sm:$0xff]
        %v477 = vld [vmem:[%s417 + $0x79] sm:$0xff]
        %v478 = vld [vmem:[%s417 + $0x81] sm:$0xff]
        %v479 = vld [vmem:[%s417 + $0x91] sm:$0xff]
        %v480 = vld [vmem:[%s417 + $0x99] sm:$0xff]
        %v481 = vld [vmem:[%s417 + $0xa9] sm:$0xff]
        %v482 = vld [vmem:[%s417 + $0xb1] sm:$0xff]
        %v483 = vperm.slane %v280, 1
        %v484 = vmul.f32 %v467, %v483
        %v485 = vmul.f32 %v468, %v483
        %v486 = vmul.f32 %v469, %v483
        %v487 = vmul.f32 %v470, %v483
        %v488 = vmul.f32 %v471, %v483
        %v489 = vmul.f32 %v472, %v483
        %v490 = vmul.f32 %v473, %v483
        %v491 = vmul.f32 %v474, %v483
        %v492 = vmul.f32 %v475, %v483
        %v493 = vmul.f32 %v476, %v483
        %v494 = vmul.f32 %v477, %v483
        %v495 = vmul.f32 %v478, %v483
        %v496 = vmul.f32 %v479, %v483
        %v497 = vmul.f32 %v480, %v483
        %v498 = vmul.f32 %v481, %v483
        %v499 = vmul.f32 %v482, %v483
        %v500 = vadd.f32 %v451, %v484
        %v501 = vadd.f32 %v452, %v485
        %v502 = vadd.f32 %v453, %v486
        %v503 = vadd.f32 %v454, %v487
        %v504 = vadd.f32 %v455, %v488
        %v505 = vadd.f32 %v456, %v489
        %v506 = vadd.f32 %v457, %v490
        %v507 = vadd.f32 %v458, %v491
        %v508 = vadd.f32 %v459, %v492
        %v509 = vadd.f32 %v460, %v493
        %v510 = vadd.f32 %v461, %v494
        %v511 = vadd.f32 %v462, %v495
        %v512 = vadd.f32 %v463, %v496
        %v513 = vadd.f32 %v464, %v497
        %v514 = vadd.f32 %v465, %v498
        %v515 = vadd.f32 %v466, %v499
        %v516 = vld [vmem:[%s417 + $0x2] sm:$0xff]
        %v517 = vld [vmem:[%s417 + $0xa] sm:$0xff]
        %v518 = vld [vmem:[%s417 + $0x1a] sm:$0xff]
        %v519 = vld [vmem:[%s417 + $0x22] sm:$0xff]
        %v520 = vld [vmem:[%s417 + $0x32] sm:$0xff]
        %v521 = vld [vmem:[%s417 + $0x3a] sm:$0xff]
        %v522 = vld [vmem:[%s417 + $0x4a] sm:$0xff]
        %v523 = vld [vmem:[%s417 + $0x52] sm:$0xff]
        %v524 = vld [vmem:[%s417 + $0x62] sm:$0xff]
        %v525 = vld [vmem:[%s417 + $0x6a] sm:$0xff]
        %v526 = vld [vmem:[%s417 + $0x7a] sm:$0xff]
        %v527 = vld [vmem:[%s417 + $0x82] sm:$0xff]
        %v528 = vld [vmem:[%s417 + $0x92] sm:$0xff]
        %v529 = vld [vmem:[%s417 + $0x9a] sm:$0xff]
        %v530 = vld [vmem:[%s417 + $0xaa] sm:$0xff]
        %v531 = vld [vmem:[%s417 + $0xb2] sm:$0xff]
        %v532 = vperm.slane %v280, 2
        %v533 = vmul.f32 %v516, %v532
        %v534 = vmul.f32 %v517, %v532
        %v535 = vmul.f32 %v518, %v532
        %v536 = vmul.f32 %v519, %v532
        %v537 = vmul.f32 %v520, %v532
        %v538 = vmul.f32 %v521, %v532
        %v539 = vmul.f32 %v522, %v532
        %v540 = vmul.f32 %v523, %v532
        %v541 = vmul.f32 %v524, %v532
        %v542 = vmul.f32 %v525, %v532
        %v543 = vmul.f32 %v526, %v532
        %v544 = vmul.f32 %v527, %v532
        %v545 = vmul.f32 %v528, %v532
        %v546 = vmul.f32 %v529, %v532
        %v547 = vmul.f32 %v530, %v532
        %v548 = vmul.f32 %v531, %v532
        %v549 = vadd.f32 %v500, %v533
        %v550 = vadd.f32 %v501, %v534
        %v551 = vadd.f32 %v502, %v535
        %v552 = vadd.f32 %v503, %v536
        %v553 = vadd.f32 %v504, %v537
        %v554 = vadd.f32 %v505, %v538
        %v555 = vadd.f32 %v506, %v539
        %v556 = vadd.f32 %v507, %v540
        %v557 = vadd.f32 %v508, %v541
        %v558 = vadd.f32 %v509, %v542
        %v559 = vadd.f32 %v510, %v543
        %v560 = vadd.f32 %v511, %v544
        %v561 = vadd.f32 %v512, %v545
        %v562 = vadd.f32 %v513, %v546
        %v563 = vadd.f32 %v514, %v547
        %v564 = vadd.f32 %v515, %v548
        %s565 = sadd.s32 %s278, 2
        %s566 = smul.u32 %s565, 24
        %s567 = scalar_lea.vmem %s261, %s566
        %v568 = vld [vmem:[%s567] sm:$0xff]
        %v569 = vld [vmem:[%s567 + $0x8] sm:$0xff]
        %v570 = vld [vmem:[%s567 + $0x18] sm:$0xff]
        %v571 = vld [vmem:[%s567 + $0x20] sm:$0xff]
        %v572 = vld [vmem:[%s567 + $0x30] sm:$0xff]
        %v573 = vld [vmem:[%s567 + $0x38] sm:$0xff]
        %v574 = vld [vmem:[%s567 + $0x48] sm:$0xff]
        %v575 = vld [vmem:[%s567 + $0x50] sm:$0xff]
        %v576 = vld [vmem:[%s567 + $0x60] sm:$0xff]
        %v577 = vld [vmem:[%s567 + $0x68] sm:$0xff]
        %v578 = vld [vmem:[%s567 + $0x78] sm:$0xff]
        %v579 = vld [vmem:[%s567 + $0x80] sm:$0xff]
        %v580 = vld [vmem:[%s567 + $0x90] sm:$0xff]
        %v581 = vld [vmem:[%s567 + $0x98] sm:$0xff]
        %v582 = vld [vmem:[%s567 + $0xa8] sm:$0xff]
        %v583 = vld [vmem:[%s567 + $0xb0] sm:$0xff]
        %v584 = vperm.slane %v281, 0
        %v585 = vmul.f32 %v568, %v584
        %v586 = vmul.f32 %v569, %v584
        %v587 = vmul.f32 %v570, %v584
        %v588 = vmul.f32 %v571, %v584
        %v589 = vmul.f32 %v572, %v584
        %v590 = vmul.f32 %v573, %v584
        %v591 = vmul.f32 %v574, %v584
        %v592 = vmul.f32 %v575, %v584
        %v593 = vmul.f32 %v576, %v584
        %v594 = vmul.f32 %v577, %v584
        %v595 = vmul.f32 %v578, %v584
        %v596 = vmul.f32 %v579, %v584
        %v597 = vmul.f32 %v580, %v584
        %v598 = vmul.f32 %v581, %v584
        %v599 = vmul.f32 %v582, %v584
        %v600 = vmul.f32 %v583, %v584
        %v601 = vadd.f32 %v549, %v585
        %v602 = vadd.f32 %v550, %v586
        %v603 = vadd.f32 %v551, %v587
        %v604 = vadd.f32 %v552, %v588
        %v605 = vadd.f32 %v553, %v589
        %v606 = vadd.f32 %v554, %v590
        %v607 = vadd.f32 %v555, %v591
        %v608 = vadd.f32 %v556, %v592
        %v609 = vadd.f32 %v557, %v593
        %v610 = vadd.f32 %v558, %v594
        %v611 = vadd.f32 %v559, %v595
        %v612 = vadd.f32 %v560, %v596
        %v613 = vadd.f32 %v561, %v597
        %v614 = vadd.f32 %v562, %v598
        %v615 = vadd.f32 %v563, %v599
        %v616 = vadd.f32 %v564, %v600
        %v617 = vld [vmem:[%s567 + $0x1] sm:$0xff]
        %v618 = vld [vmem:[%s567 + $0x9] sm:$0xff]
        %v619 = vld [vmem:[%s567 + $0x19] sm:$0xff]
        %v620 = vld [vmem:[%s567 + $0x21] sm:$0xff]
        %v621 = vld [vmem:[%s567 + $0x31] sm:$0xff]
        %v622 = vld [vmem:[%s567 + $0x39] sm:$0xff]
        %v623 = vld [vmem:[%s567 + $0x49] sm:$0xff]
        %v624 = vld [vmem:[%s567 + $0x51] sm:$0xff]
        %v625 = vld [vmem:[%s567 + $0x61] sm:$0xff]
        %v626 = vld [vmem:[%s567 + $0x69] sm:$0xff]
        %v627 = vld [vmem:[%s567 + $0x79] sm:$0xff]
        %v628 = vld [vmem:[%s567 + $0x81] sm:$0xff]
        %v629 = vld [vmem:[%s567 + $0x91] sm:$0xff]
        %v630 = vld [vmem:[%s567 + $0x99] sm:$0xff]
        %v631 = vld [vmem:[%s567 + $0xa9] sm:$0xff]
        %v632 = vld [vmem:[%s567 + $0xb1] sm:$0xff]
        %v633 = vperm.slane %v281, 1
        %v634 = vmul.f32 %v617, %v633
        %v635 = vmul.f32 %v618, %v633
        %v636 = vmul.f32 %v619, %v633
        %v637 = vmul.f32 %v620, %v633
        %v638 = vmul.f32 %v621, %v633
        %v639 = vmul.f32 %v622, %v633
        %v640 = vmul.f32 %v623, %v633
        %v641 = vmul.f32 %v624, %v633
        %v642 = vmul.f32 %v625, %v633
        %v643 = vmul.f32 %v626, %v633
        %v644 = vmul.f32 %v627, %v633
        %v645 = vmul.f32 %v628, %v633
        %v646 = vmul.f32 %v629, %v633
        %v647 = vmul.f32 %v630, %v633
        %v648 = vmul.f32 %v631, %v633
        %v649 = vmul.f32 %v632, %v633
        %v650 = vadd.f32 %v601, %v634
        %v651 = vadd.f32 %v602, %v635
        %v652 = vadd.f32 %v603, %v636
        %v653 = vadd.f32 %v604, %v637
        %v654 = vadd.f32 %v605, %v638
        %v655 = vadd.f32 %v606, %v639
        %v656 = vadd.f32 %v607, %v640
        %v657 = vadd.f32 %v608, %v641
        %v658 = vadd.f32 %v609, %v642
        %v659 = vadd.f32 %v610, %v643
        %v660 = vadd.f32 %v611, %v644
        %v661 = vadd.f32 %v612, %v645
        %v662 = vadd.f32 %v613, %v646
        %v663 = vadd.f32 %v614, %v647
        %v664 = vadd.f32 %v615, %v648
        %v665 = vadd.f32 %v616, %v649
        %v666 = vld [vmem:[%s567 + $0x2] sm:$0xff]
        %v667 = vld [vmem:[%s567 + $0xa] sm:$0xff]
        %v668 = vld [vmem:[%s567 + $0x1a] sm:$0xff]
        %v669 = vld [vmem:[%s567 + $0x22] sm:$0xff]
        %v670 = vld [vmem:[%s567 + $0x32] sm:$0xff]
        %v671 = vld [vmem:[%s567 + $0x3a] sm:$0xff]
        %v672 = vld [vmem:[%s567 + $0x4a] sm:$0xff]
        %v673 = vld [vmem:[%s567 + $0x52] sm:$0xff]
        %v674 = vld [vmem:[%s567 + $0x62] sm:$0xff]
        %v675 = vld [vmem:[%s567 + $0x6a] sm:$0xff]
        %v676 = vld [vmem:[%s567 + $0x7a] sm:$0xff]
        %v677 = vld [vmem:[%s567 + $0x82] sm:$0xff]
        %v678 = vld [vmem:[%s567 + $0x92] sm:$0xff]
        %v679 = vld [vmem:[%s567 + $0x9a] sm:$0xff]
        %v680 = vld [vmem:[%s567 + $0xaa] sm:$0xff]
        %v681 = vld [vmem:[%s567 + $0xb2] sm:$0xff]
        %v682 = vperm.slane %v281, 2
        %v683 = vmul.f32 %v666, %v682
        %v684 = vmul.f32 %v667, %v682
        %v685 = vmul.f32 %v668, %v682
        %v686 = vmul.f32 %v669, %v682
        %v687 = vmul.f32 %v670, %v682
        %v688 = vmul.f32 %v671, %v682
        %v689 = vmul.f32 %v672, %v682
        %v690 = vmul.f32 %v673, %v682
        %v691 = vmul.f32 %v674, %v682
        %v692 = vmul.f32 %v675, %v682
        %v693 = vmul.f32 %v676, %v682
        %v694 = vmul.f32 %v677, %v682
        %v695 = vmul.f32 %v678, %v682
        %v696 = vmul.f32 %v679, %v682
        %v697 = vmul.f32 %v680, %v682
        %v698 = vmul.f32 %v681, %v682
        %v699 = vadd.f32 %v650, %v683
        %v700 = vadd.f32 %v651, %v684
        %v701 = vadd.f32 %v652, %v685
        %v702 = vadd.f32 %v653, %v686
        %v703 = vadd.f32 %v654, %v687
        %v704 = vadd.f32 %v655, %v688
        %v705 = vadd.f32 %v656, %v689
        %v706 = vadd.f32 %v657, %v690
        %v707 = vadd.f32 %v658, %v691
        %v708 = vadd.f32 %v659, %v692
        %v709 = vadd.f32 %v660, %v693
        %v710 = vadd.f32 %v661, %v694
        %v711 = vadd.f32 %v662, %v695
        %v712 = vadd.f32 %v663, %v696
        %v713 = vadd.f32 %v664, %v697
        %v714 = vadd.f32 %v665, %v698
        %v715 = vld [vmem:[%s2] sm:$0xff]
        %vm716 = vcmask 31744
        %v718 = vsel %vm716, %v715, 0
        %v721 = vsel %vm716, %v699, 0
        %v724 = vsel %vm716, %v700, 0
        %v727 = vsel %vm716, %v701, 0
        %v730 = vsel %vm716, %v702, 0
        %v733 = vsel %vm716, %v703, 0
        %v736 = vsel %vm716, %v704, 0
        %v739 = vsel %vm716, %v705, 0
        %v742 = vsel %vm716, %v706, 0
        %v745 = vsel %vm716, %v707, 0
        %v748 = vsel %vm716, %v708, 0
        %v751 = vsel %vm716, %v709, 0
        %v754 = vsel %vm716, %v710, 0
        %v757 = vsel %vm716, %v711, 0
        %v760 = vsel %vm716, %v712, 0
        %v763 = vsel %vm716, %v713, 0
        %v766 = vsel %vm716, %v714, 0
        %768 = vmatpush.xpose.msra.mxu0 %v766
        %769 = vmatpush.xpose.msra.mxu0 %v763
        %770 = vmatpush.xpose.msra.mxu0 %v760
        %771 = vmatpush.xpose.msra.mxu0 %v757
        %772 = vmatpush.xpose.msra.mxu0 %v754
        %773 = vmatpush.xpose.msra.mxu0 %v751
        %774 = vmatpush.xpose.msra.mxu0 %v748
        %775 = vmatpush.xpose.msra.mxu0 %v745
        %776 = vmatpush.xpose.msra.mxu0 %v742
        %777 = vmatpush.xpose.msra.mxu0 %v739
        %778 = vmatpush.xpose.msra.mxu0 %v736
        %779 = vmatpush.xpose.msra.mxu0 %v733
        %780 = vmatpush.xpose.msra.mxu0 %v730
        %781 = vmatpush.xpose.msra.mxu0 %v727
        %782 = vmatpush.xpose.msra.mxu0 %v724
        %783 = vmatpush.xpose.msra.mxu0 %v721
        %784 = vmatmul.f32.gmra.mxu0 %v718
        %v785 = vpop.f32.mrf.mxu0
        %v786 = vadd.f32 0.0, %v785
        %787 = vdwg.mxu0
        %788 = vst [vmem:[%s240] sm:$0xff] %v786
        %789 = vadd.xlane.f32.xlu0 %v786
        %v790 = vpop.xlane.xlu0 %789
        %vm791 = vcmask 7168
        %792 = vst.msk [vmem:[%s267] sm:$0xff] %vm791, %v790
        %v793 = vmul.f32 %v786, %v786
        %794 = vadd.xlane.f32.xlu0 %v793
        %v795 = vpop.xlane.xlu0 %794
        %796 = vst.msk [vmem:[%s275] sm:$0xff] %vm791, %v795
        %s797 = sand.u32 %s110, 1
        %s798 = scalar_lea.sflag [#allocation3], %s797
        %s799 = sand.u32 %s110, 1
        %s800 = smul.addr %s799, 8
        %s801 = scalar_lea.vmem [#allocation2], %s800
        %s802 = smul.u32 %s24, 2
        %s803 = sadd.s32 %s802, %s25
        %p804 = scmp.lt.s32.totalorder %s803, 3
        %s805 = scalar_select %p804, %s803, 3
        %s806 = smul.addr %s805, 8
        %s807 = scalar_lea.vmem %s4, %s806
        %s808 = smul.u32 %s24, 2
        %s809 = sadd.s32 %s808, %s25
        %p810 = scmp.lt.s32.totalorder %s809, 3
        %s811 = scalar_select %p810, %s809, 3
        %s812 = smul.addr %s811, 8
        %s813 = scalar_lea.vmem %s5, %s812
        // Predicated region
        $region33: #{tpu_custom_call.1} parent=31 // pred_check
          %p814 = pneg %p120
        $region34: #{tpu_custom_call.1} parent=31 // pred_check_branch
          %816 = sbr.rel (%p814) target = $region36
        $region35: #{tpu_custom_call.1} parent=31 // pred_region
          %818 = vsyncadd %s798, 0
          %s819 = smul.addr %s24, 2
          %s820 = sadd.s32 %s25, %s819
          %s821 = smul.addr %s820, 8
          %s822 = scalar_lea.hbm %s3, %s821
          %s824 = sshll.u32 %s801, 4
          %s825 = int_to_ptr.vmem [resolvable:$true] %s824
          %s826 = sshll.u32 %s822, 4
          %s827 = int_to_ptr.hbm [resolvable:$true] %s826
          %829 = dma.vmem_to_hbm [thread:$0]  %s825, 128, %s827, %s798
        $region36: #{tpu_custom_call.1} parent=31 // pred_fallthru
          _
        // Predicated region
        $region37: #{tpu_custom_call.1} parent=31 // pred_check
          %p830 = pneg %p150
        $region38: #{tpu_custom_call.1} parent=31 // pred_check_branch
          %832 = sbr.rel (%p830) target = $region40
        $region39: #{tpu_custom_call.1} parent=31 // pred_region
          %s833 = smul.u32 %s24, 2
          %s834 = sadd.s32 %s833, %s25
        $region40: #{tpu_custom_call.1} parent=31 // pred_fallthru
          _
        // Predicated region
        $region41: #{tpu_custom_call.1} parent=31 // pred_check
          %p835 = pneg %p180
        $region42: #{tpu_custom_call.1} parent=31 // pred_check_branch
          %837 = sbr.rel (%p835) target = $region44
        $region43: #{tpu_custom_call.1} parent=31 // pred_region
          %s838 = smul.u32 %s24, 2
          %s839 = sadd.s32 %s838, %s25
        $region44: #{tpu_custom_call.1} parent=31 // pred_fallthru
          _
      $region32: #{tpu_custom_call.1} parent=5 // pred_fallthru
        _
      %p840 = scmp.le.s32.totalorder 2, %s15
      // Predicated region
      $region45: #{tpu_custom_call.1} parent=5 // pred_check
        %p841 = pneg %p840
      $region46: #{tpu_custom_call.1} parent=5 // pred_check_branch
        %843 = sbr.rel (%p841) target = $region48
      $region47: #{tpu_custom_call.1} parent=5 // pred_region
        %s844 = ssub.s32 %s15, 2
        // Predicated region
        $region49: #{tpu_custom_call.1} parent=47 // pred_check
          %p845 = pneg %p126
        $region50: #{tpu_custom_call.1} parent=47 // pred_check_branch
          %847 = sbr.rel (%p845) target = $region52
        $region51: #{tpu_custom_call.1} parent=47 // pred_region
          %s848 = sand.u32 %s111, 1
          %s849 = scalar_lea.sflag [#allocation3], %s848
          %s850 = sand.u32 %s111, 1
          %s851 = smul.addr %s850, 8
          %s852 = scalar_lea.vmem [#allocation2], %s851
          %854 = dma.done %s849, 128
        $region52: #{tpu_custom_call.1} parent=47 // pred_fallthru
          _
        // Predicated region
        $region53: #{tpu_custom_call.1} parent=47 // pred_check
          %p855 = pneg %p156
        $region54: #{tpu_custom_call.1} parent=47 // pred_check_branch
          %857 = sbr.rel (%p855) target = $region56
        $region55: #{tpu_custom_call.1} parent=47 // pred_region
          %s858 = smul.u32 %s26, 2
          %s859 = sadd.s32 %s858, %s27
          %p860 = scmp.lt.s32.totalorder %s859, 3
          %s861 = scalar_select %p860, %s859, 3
          %s862 = smul.addr %s861, 8
          %s863 = scalar_lea.vmem %s4, %s862
        $region56: #{tpu_custom_call.1} parent=47 // pred_fallthru
          _
        // Predicated region
        $region57: #{tpu_custom_call.1} parent=47 // pred_check
          %p864 = pneg %p186
        $region58: #{tpu_custom_call.1} parent=47 // pred_check_branch
          %866 = sbr.rel (%p864) target = $region60
        $region59: #{tpu_custom_call.1} parent=47 // pred_region
          %s867 = smul.u32 %s26, 2
          %s868 = sadd.s32 %s867, %s27
          %p869 = scmp.lt.s32.totalorder %s868, 3
          %s870 = scalar_select %p869, %s868, 3
          %s871 = smul.addr %s870, 8
          %s872 = scalar_lea.vmem %s5, %s871
        $region60: #{tpu_custom_call.1} parent=47 // pred_fallthru
          _
      $region48: #{tpu_custom_call.1} parent=5 // pred_fallthru
        _
    $region6: #{tpu_custom_call.1} parent=1 // loop_footer
      %s19 = sadd.s32 1, %s15
    $region7: #{tpu_custom_call.1} parent=1 // loop_footer_branch
      %14 = sbr.rel target = $region3
    $region8: #{tpu_custom_call.1} parent=1 // loop_exit
      _
    %873 = vsyncpa [#allocation3], 1
    %s874 = scalar_lea.sflag [#allocation3], 1
    %875 = vsyncpa %s874, 1

</llo_original>
